<compile_context>
chip_gen: v6e
topology: v6e:2x2x1
jax: 0.10.0
libtpu: 0.0.40
codegen_flags: <defaults>
</compile_context>

<pallas_src>
import math
import functools

import jax
import jax.numpy as jnp
from jax.experimental import pallas as pl
from jax.experimental.pallas import tpu as pltpu

HEAD_PAD = 8  # value-head weight padded to 8 sublanes -> lane-dense (8, TILE_B) store


def _round_up(x, m):
    return ((x + m - 1) // m) * m


def _choose_batch_tiling(B, tile_b):
    """Pick (TILE_B, num_tiles).

    Goals: tiles big enough to amortize per-grid-step overhead (~0.35 us),
    >= 2 even tiles when B is large enough (so v7x's two TensorCores both get
    work from the 'parallel' batch axis), and minimal batch padding.
    """
    if B <= 256:
        tile = _round_up(B, 8)            # one small tile; too little work to split
        return tile, 1
    num_tiles = max(2, pl.cdiv(B, tile_b))  # >= 2 steps -> both v7x TCs busy
    if num_tiles % 2:
        num_tiles += 1                      # even split across the 2 TCs
    tile = _round_up(pl.cdiv(B, num_tiles), 8)
    return tile, num_tiles


def _critic_kernel(x_ref, w1_ref, w2_ref, w3t_ref, b_ref, out_ref, *, H1, H2):
    # x_ref:   (TILE_B, S)      activations (f32 or bf16)
    # w1_ref:  (S,  H1)  bf16   resident (constant index_map)
    # w2_ref:  (H1, H2)  bf16   resident
    # w3t_ref: (8,  H2)  bf16   row 0 = value-head weight w3^T, rows 1..7 zero
    # b_ref:   (1, H1+H2+1) f32 packed biases [b1 | b2 | b3]
    # out_ref: (8, TILE_B) f32  row 0 = values for this batch tile (lane-dense)
    x = x_ref[...].astype(jnp.bfloat16)     # no-op if state is already bf16

    b1 = b_ref[:, :H1]
    b2 = b_ref[:, H1:H1 + H2]
    b3 = b_ref[:, H1 + H2:H1 + H2 + 1]      # (1, 1) -> broadcasts over the block

    h = jnp.dot(x, w1_ref[...], preferred_element_type=jnp.float32) + b1
    h = jnp.maximum(h, 0.0).astype(jnp.bfloat16)

    g = jnp.dot(h, w2_ref[...], preferred_element_type=jnp.float32) + b2
    g = jnp.maximum(g, 0.0).astype(jnp.bfloat16)

    # Transposed value head: (8, H2) . (TILE_B, H2)^T -> (8, TILE_B).
    # Batch runs along lanes, so the store is one unmasked lane-dense block
    # instead of a (TILE_B, 1) masked store or a 128-lane padded writeback.
    v = jax.lax.dot_general(
        w3t_ref[...], g, (((1,), (1,)), ((), ())),
        preferred_element_type=jnp.float32)
    out_ref[...] = v + b3


def critic_forward(state, params, *, tile_b=1024):
    """state: [B, state_size] (f32 or bf16) -> value [B, 1] f32."""
    B, S = state.shape
    w1, w2, w3t, b_all = params["w1"], params["w2"], params["w3t"], params["b_all"]
    H1, H2 = w1.shape[1], w2.shape[1]

    TILE_B, num_tiles = _choose_batch_tiling(B, tile_b)
    B_pad = TILE_B * num_tiles
    if B_pad != B:
        state = jnp.pad(state, ((0, B_pad - B), (0, 0)))

    itemsize = jnp.dtype(state.dtype).itemsize
    cost = pl.CostEstimate(
        flops=2 * B_pad * (S * H1 + H1 * H2 + HEAD_PAD * H2),
        transcendentals=0,
        bytes_accessed=int(B_pad * S * itemsize
                           + (w1.size + w2.size + w3t.size) * 2   # bf16 weights
                           + b_all.size * 4
                           + num_tiles * HEAD_PAD * TILE_B * 4),  # compact output
    )

    kernel = functools.partial(_critic_kernel, H1=H1, H2=H2)

    out = pl.pallas_call(
        kernel,
        out_shape=jax.ShapeDtypeStruct((num_tiles * HEAD_PAD, TILE_B), jnp.float32),
        grid=(num_tiles,),
        in_specs=[
            pl.BlockSpec((TILE_B, S), lambda i: (i, 0)),       # batch-tiled activations
            pl.BlockSpec((S, H1), lambda i: (0, 0)),           # resident weights
            pl.BlockSpec((H1, H2), lambda i: (0, 0)),
            pl.BlockSpec((HEAD_PAD, H2), lambda i: (0, 0)),
            pl.BlockSpec((1, H1 + H2 + 1), lambda i: (0, 0)),  # packed biases
        ],
        out_specs=pl.BlockSpec((HEAD_PAD, TILE_B), lambda i: (i, 0)),
        compiler_params=pltpu.CompilerParams(
            dimension_semantics=("parallel",)),                # shard batch tiles on v7x
        cost_estimate=cost,
    )(state, w1, w2, w3t, b_all)

    # Row 0 of each (8, TILE_B) block holds that tile's values.  A fused consumer
    # could take `out` directly; this extraction now touches ~16x less HBM than
    # slicing a (B_pad, 128) padded head would.
    value = out.reshape(num_tiles, HEAD_PAD, TILE_B)[:, 0, :].reshape(-1)[:B]
    return value[:, None]


def init_params(key, state_size, H1=128, H2=128):
    """PyTorch nn.Linear default init (U(-1/sqrt(fan_in), 1/sqrt(fan_in))), then
    last-layer weight *= 0.1 and bias *= 0.0, like the module."""
    ks = jax.random.split(key, 6)

    def linear(kw, kb, fan_in, fan_out):
        bound = 1.0 / math.sqrt(fan_in)
        w = jax.random.uniform(kw, (fan_in, fan_out), jnp.float32, -bound, bound)
        b = jax.random.uniform(kb, (1, fan_out), jnp.float32, -bound, bound)
        return w, b

    w1, b1 = linear(ks[0], ks[1], state_size, H1)
    w2, b2 = linear(ks[2], ks[3], H1, H2)
    w3, b3 = linear(ks[4], ks[5], H2, 1)
    w3 = w3 * 0.1           # list(self.network)[-1].weight.data.mul_(0.1)
    b3 = b3 * 0.0           # list(self.network)[-1].bias.data.mul_(0.0)

    # Sublane-padded, transposed value head: (8, H2); row 0 = w3^T, rows 1..7 zero.
    w3t = jnp.zeros((HEAD_PAD, H2), jnp.float32).at[0, :].set(w3[:, 0])

    return dict(
        w1=w1.astype(jnp.bfloat16),
        w2=w2.astype(jnp.bfloat16),
        w3t=w3t.astype(jnp.bfloat16),
        b_all=jnp.concatenate([b1, b2, b3], axis=1),   # f32 (1, H1+H2+1)
    )


def _reference_bf16(state, p):
    """Pure-JAX reference mirroring the kernel's dtypes."""
    H1, H2 = p["w1"].shape[1], p["w2"].shape[1]
    b1 = p["b_all"][:, :H1]
    b2 = p["b_all"][:, H1:H1 + H2]
    b3 = p["b_all"][:, H1 + H2:]
    x = state.astype(jnp.bfloat16)
    h = jnp.maximum(jnp.dot(x, p["w1"], preferred_element_type=jnp.float32) + b1, 0.0)
    h = h.astype(jnp.bfloat16)
    g = jnp.maximum(jnp.dot(h, p["w2"], preferred_element_type=jnp.float32) + b2, 0.0)
    g = g.astype(jnp.bfloat16)
    w3 = p["w3t"].T[:, :1]                          # (H2, 1)
    return jnp.dot(g, w3, preferred_element_type=jnp.float32) + b3


def _reference_f32(state, p):
    """Full-f32 math (PyTorch module semantics) using the same (bf16-stored) weights."""
    H1, H2 = p["w1"].shape[1], p["w2"].shape[1]
    b1 = p["b_all"][:, :H1]
    b2 = p["b_all"][:, H1:H1 + H2]
    b3 = p["b_all"][:, H1 + H2:]
    h = jnp.maximum(state @ p["w1"].astype(jnp.float32) + b1, 0.0)
    g = jnp.maximum(h @ p["w2"].astype(jnp.float32) + b2, 0.0)
    w3 = p["w3t"].astype(jnp.float32).T[:, :1]
    return g @ w3 + b3


if __name__ == "__main__":
    key = jax.random.PRNGKey(0)
    k_state, k_params, k_state2 = jax.random.split(key, 3)

    state_size, H1, H2 = 16, 128, 128
    params = init_params(k_params, state_size, H1, H2)

    # Small batch: single-tile path (B=5 padded to 8).
    B = 5
    state = jax.random.normal(k_state, (B, state_size), jnp.float32)
    value = critic_forward(state, params)
    jax.block_until_ready(value)
    assert value.shape == (B, 1)
    assert jnp.allclose(value, _reference_bf16(state, params), atol=2e-3, rtol=2e-3)
    # bf16 weights/activations deviate ~1e-2 relative from pure-f32 torch semantics.
    assert jnp.allclose(value, _reference_f32(state, params), atol=3e-2, rtol=3e-2)

    # Larger batch: multi-tile 'parallel' grid path (2 even tiles -> both v7x TCs).
    B2 = 300
    state2 = jax.random.normal(k_state2, (B2, state_size), jnp.float32)
    value2 = critic_forward(state2, params)
    jax.block_until_ready(value2)
    assert value2.shape == (B2, 1)
    assert jnp.allclose(value2, _reference_bf16(state2, params), atol=2e-3, rtol=2e-3)

    print("KERNEL_OK")
</pallas_src>

<mosaic_0001>
module attributes {stable_mosaic.version = 11 : i64} {
  func.func @_critic_kernel(%arg0: i32, %arg1: memref<8x16xf32, #tpu.memory_space<vmem>>, %arg2: memref<16x128xbf16, #tpu.memory_space<vmem>>, %arg3: memref<128x128xbf16, #tpu.memory_space<vmem>>, %arg4: memref<8x128xbf16, #tpu.memory_space<vmem>>, %arg5: memref<1x257xf32, #tpu.memory_space<vmem>>, %arg6: memref<8x8xf32, #tpu.memory_space<vmem>>) attributes {dimension_semantics = [#tpu.dimension_semantics<parallel>], iteration_bounds = array<i64: 1>, scalar_prefetch = 0 : i64, scratch_operands = 0 : i64, tpu.core_type = #tpu.core_type<tc>, window_params = [{transform_indices = @transform_0, window_bounds = array<i64: 8, 16>}, {pipeline_mode = #tpu.pipeline_mode<synchronous>, transform_indices = @transform_1, window_bounds = array<i64: 16, 128>}, {pipeline_mode = #tpu.pipeline_mode<synchronous>, transform_indices = @transform_2, window_bounds = array<i64: 128, 128>}, {pipeline_mode = #tpu.pipeline_mode<synchronous>, transform_indices = @transform_3, window_bounds = array<i64: 8, 128>}, {pipeline_mode = #tpu.pipeline_mode<synchronous>, transform_indices = @transform_4, window_bounds = array<i64: 1, 257>}, {transform_indices = @transform_5, window_bounds = array<i64: 8, 8>}]} {
    %c0 = arith.constant 0 : index
    %c0_0 = arith.constant 0 : index
    %0 = vector.load %arg1[%c0, %c0_0] : memref<8x16xf32, #tpu.memory_space<vmem>>, vector<8x16xf32>
    %1 = arith.truncf %0 : vector<8x16xf32> to vector<8x16xbf16>
    %c0_1 = arith.constant 0 : index
    %c0_2 = arith.constant 0 : index
    %2 = vector.load %arg5[%c0_1, %c0_2] : memref<1x257xf32, #tpu.memory_space<vmem>>, vector<1x128xf32>
    %c0_3 = arith.constant 0 : index
    %c128 = arith.constant 128 : index
    %3 = vector.load %arg5[%c0_3, %c128] : memref<1x257xf32, #tpu.memory_space<vmem>>, vector<1x128xf32>
    %c0_4 = arith.constant 0 : index
    %c256 = arith.constant 256 : index
    %4 = vector.load %arg5[%c0_4, %c256] : memref<1x257xf32, #tpu.memory_space<vmem>>, vector<1x1xf32>
    %c0_5 = arith.constant 0 : index
    %c0_6 = arith.constant 0 : index
    %5 = vector.load %arg2[%c0_5, %c0_6] : memref<16x128xbf16, #tpu.memory_space<vmem>>, vector<16x128xbf16>
    %cst = arith.constant dense<0.000000e+00> : vector<8x128xf32>
    %6 = tpu.matmul %1, %5, %cst {dimension_numbers = #tpu.dot_dimension_numbers<[1], [0], [0], [1], [0, 0, 1, 1], [], []>} : vector<8x16xbf16>, vector<16x128xbf16>, vector<8x128xf32> -> vector<8x128xf32>
    %7 = vector.broadcast %2 : vector<1x128xf32> to vector<8x128xf32>
    %8 = arith.addf %6, %7 : vector<8x128xf32>
    %cst_7 = arith.constant 0.000000e+00 : f32
    %9 = vector.broadcast %cst_7 : f32 to vector<8x128xf32>
    %10 = arith.maximumf %8, %9 : vector<8x128xf32>
    %11 = arith.truncf %10 : vector<8x128xf32> to vector<8x128xbf16>
    %c0_8 = arith.constant 0 : index
    %c0_9 = arith.constant 0 : index
    %12 = vector.load %arg3[%c0_8, %c0_9] : memref<128x128xbf16, #tpu.memory_space<vmem>>, vector<128x128xbf16>
    %cst_10 = arith.constant dense<0.000000e+00> : vector<8x128xf32>
    %13 = tpu.matmul %11, %12, %cst_10 {dimension_numbers = #tpu.dot_dimension_numbers<[1], [0], [0], [1], [0, 0, 1, 1], [], []>} : vector<8x128xbf16>, vector<128x128xbf16>, vector<8x128xf32> -> vector<8x128xf32>
    %14 = vector.broadcast %3 : vector<1x128xf32> to vector<8x128xf32>
    %15 = arith.addf %13, %14 : vector<8x128xf32>
    %cst_11 = arith.constant 0.000000e+00 : f32
    %16 = vector.broadcast %cst_11 : f32 to vector<8x128xf32>
    %17 = arith.maximumf %15, %16 : vector<8x128xf32>
    %18 = arith.truncf %17 : vector<8x128xf32> to vector<8x128xbf16>
    %c0_12 = arith.constant 0 : index
    %c0_13 = arith.constant 0 : index
    %19 = vector.load %arg4[%c0_12, %c0_13] : memref<8x128xbf16, #tpu.memory_space<vmem>>, vector<8x128xbf16>
    %cst_14 = arith.constant dense<0.000000e+00> : vector<8x8xf32>
    %20 = tpu.matmul %19, %18, %cst_14 {dimension_numbers = #tpu.dot_dimension_numbers<[1], [1], [0], [0], [0, 0, 1, 0], [], []>} : vector<8x128xbf16>, vector<8x128xbf16>, vector<8x8xf32> -> vector<8x8xf32>
    %21 = vector.broadcast %4 : vector<1x1xf32> to vector<8x8xf32>
    %22 = arith.addf %20, %21 : vector<8x8xf32>
    %c0_15 = arith.constant 0 : index
    %c0_16 = arith.constant 0 : index
    %23 = vector.load %arg6[%c0_15, %c0_16] : memref<8x8xf32, #tpu.memory_space<vmem>>, vector<8x8xf32>
    tpu.vector_store %arg6[%c0_15, %c0_16], %22 {strides = array<i32>} : memref<8x8xf32, #tpu.memory_space<vmem>>, vector<8x8xf32>,
    return
  }
  func.func @transform_0(%arg0: i32) -> (i32, i32) {
    %c0_i32 = arith.constant 0 : i32
    %c0_i32_0 = arith.constant 0 : i32
    return %arg0, %c0_i32 : i32, i32
  }
  func.func @transform_1(%arg0: i32) -> (i32, i32) {
    %c0_i32 = arith.constant 0 : i32
    %c0_i32_0 = arith.constant 0 : i32
    %c0_i32_1 = arith.constant 0 : i32
    return %c0_i32, %c0_i32_0 : i32, i32
  }
  func.func @transform_2(%arg0: i32) -> (i32, i32) {
    %c0_i32 = arith.constant 0 : i32
    %c0_i32_0 = arith.constant 0 : i32
    %c0_i32_1 = arith.constant 0 : i32
    return %c0_i32, %c0_i32_0 : i32, i32
  }
  func.func @transform_3(%arg0: i32) -> (i32, i32) {
    %c0_i32 = arith.constant 0 : i32
    %c0_i32_0 = arith.constant 0 : i32
    %c0_i32_1 = arith.constant 0 : i32
    return %c0_i32, %c0_i32_0 : i32, i32
  }
  func.func @transform_4(%arg0: i32) -> (i32, i32) {
    %c0_i32 = arith.constant 0 : i32
    %c0_i32_0 = arith.constant 0 : i32
    %c0_i32_1 = arith.constant 0 : i32
    return %c0_i32, %c0_i32_0 : i32, i32
  }
  func.func @transform_5(%arg0: i32) -> (i32, i32) {
    %c0_i32 = arith.constant 0 : i32
    %c0_i32_0 = arith.constant 0 : i32
    return %arg0, %c0_i32 : i32, i32
  }
}

</mosaic_0001>

<llo_original>
// kernel: tpu_custom_call.1
$region0: #{tpu_custom_call.1}
  #allocation0 [shape = 'u32[]', space=smem, size = 0x4, offset = 0x4, fixed_abs, tag = 'smem constant byte address 0x4 - core index']
  #allocation1 [shape = 'u32[144,128]{1,0:T(1,128)}', space=vmem, size = 0x12000, scoped, tag = 'internal scratch']
  %s0 = inlined_call_operand.hbm [shape: f32[8,16], index: 0, kind: input, shape index: {}]
  %s1 = inlined_call_operand.hbm [shape: bf16[16,128], index: 1, kind: input, shape index: {}]
  %s2 = inlined_call_operand.hbm [shape: bf16[128,128], index: 2, kind: input, shape index: {}]
  %s3 = inlined_call_operand.vmem [shape: bf16[8,128], index: 3, kind: input, shape index: {}]
  %s4 = inlined_call_operand.vmem [shape: f32[1,257], index: 4, kind: input, shape index: {}]
  %s5 = inlined_call_operand.hbm [shape: f32[8,8], index: 5, kind: output, shape index: {}]
  %s6 = sld [smem:[#allocation0]]
  $region42: #{tpu_custom_call.1} parent=0
    _
  %s8 = ssub.s32 1, %s6
  %s9 = scalar_select 0, %s8, %s6
  $region1: #{tpu_custom_call.1} parent=0
    #allocation2 [shape = 'u8[4096]{0}', space=vmem, size = 0x1000, scoped, tag = 'input window, operand 0, single buffered']
    #allocation3 [shape = 's32[1]{0}', space=sflag, size = 0x4, scoped, tag = 'scoped memory for tpu_custom_call.1']
    #allocation4 [shape = 's32[1]{0}', space=sflag, size = 0x4, scoped, tag = 'scoped memory for tpu_custom_call.1']
    #allocation5 [shape = 'u8[4096]{0}', space=vmem, size = 0x1000, scoped, tag = 'input window, operand 1, single buffered']
    #allocation6 [shape = 's32[1]{0}', space=sflag, size = 0x4, scoped, tag = 'scoped memory for tpu_custom_call.1']
    #allocation7 [shape = 'u8[32768]{0}', space=vmem, size = 0x8000, scoped, tag = 'input window, operand 2, single buffered']
    #allocation8 [shape = 'u8[4096]{0}', space=vmem, size = 0x1000, scoped, tag = 'output window, operand 0, single buffered']
    %10 = vsyncpa [#allocation3], 0
    %11 = vsyncpa [#allocation6], 0
    %12 = vsyncpa [#allocation4], 0
    // Predicated region
    $region2: #{tpu_custom_call.1} parent=1 // pred_check
      _
    $region3: #{tpu_custom_call.1} parent=1 // pred_check_branch
      %14 = sbr.rel (0) target = $region5
    $region4: #{tpu_custom_call.1} parent=1 // pred_region
      %s16 = ssub.s32 128, 128
      %17 = vsyncadd [#allocation3], %s16
      %s19 = sshll.u32 [#allocation2], 4
      %s20 = int_to_ptr.vmem [resolvable:$true] %s19
      %22 = dma.hbm_to_vmem [thread:$0]  %s0, 128, %s20, [#allocation3]
    $region5: #{tpu_custom_call.1} parent=1 // pred_fallthru
      _
    // Predicated region
    $region6: #{tpu_custom_call.1} parent=1 // pred_check
      _
    $region7: #{tpu_custom_call.1} parent=1 // pred_check_branch
      %24 = sbr.rel (0) target = $region9
    $region8: #{tpu_custom_call.1} parent=1 // pred_region
      %s26 = ssub.s32 128, 128
      %27 = vsyncadd [#allocation6], %s26
      %s28 = sshll.u32 [#allocation5], 4
      %s29 = int_to_ptr.vmem [resolvable:$true] %s28
      %34 = dma.hbm_to_vmem [thread:$0]  %s1, 128, %s29, [#allocation6], 64, 64, 4
    $region9: #{tpu_custom_call.1} parent=1 // pred_fallthru
      _
    // Predicated region
    $region10: #{tpu_custom_call.1} parent=1 // pred_check
      _
    $region11: #{tpu_custom_call.1} parent=1 // pred_check_branch
      %36 = sbr.rel (0) target = $region13
    $region12: #{tpu_custom_call.1} parent=1 // pred_region
      %s38 = ssub.s32 1024, 1024
      %39 = vsyncadd [#allocation6], %s38
      %s40 = sshll.u32 [#allocation7], 4
      %s41 = int_to_ptr.vmem [resolvable:$true] %s40
      %46 = dma.hbm_to_vmem [thread:$0]  %s2, 1024, %s41, [#allocation6], 64, 64, 4
    $region13: #{tpu_custom_call.1} parent=1 // pred_fallthru
      _
    // Predicated region
    $region14: #{tpu_custom_call.1} parent=1 // pred_check
      _
    $region15: #{tpu_custom_call.1} parent=1 // pred_check_branch
      %48 = sbr.rel (0) target = $region17
    $region16: #{tpu_custom_call.1} parent=1 // pred_region
      _
    $region17: #{tpu_custom_call.1} parent=1 // pred_fallthru
      _
    // Predicated region
    $region18: #{tpu_custom_call.1} parent=1 // pred_check
      _
    $region19: #{tpu_custom_call.1} parent=1 // pred_check_branch
      %50 = sbr.rel (0) target = $region21
    $region20: #{tpu_custom_call.1} parent=1 // pred_region
      _
    $region21: #{tpu_custom_call.1} parent=1 // pred_fallthru
      _
    // Predicated region
    $region22: #{tpu_custom_call.1} parent=1 // pred_check
      _
    $region23: #{tpu_custom_call.1} parent=1 // pred_check_branch
      %52 = sbr.rel (0) target = $region25
    $region24: #{tpu_custom_call.1} parent=1 // pred_region
      %53 = dma.done [#allocation3], 128
    $region25: #{tpu_custom_call.1} parent=1 // pred_fallthru
      _
    // Predicated region
    $region26: #{tpu_custom_call.1} parent=1 // pred_check
      _
    $region27: #{tpu_custom_call.1} parent=1 // pred_check_branch
      %55 = sbr.rel (0) target = $region29
    $region28: #{tpu_custom_call.1} parent=1 // pred_region
      %56 = dma.done [#allocation6], 128
    $region29: #{tpu_custom_call.1} parent=1 // pred_fallthru
      _
    // Predicated region
    $region30: #{tpu_custom_call.1} parent=1 // pred_check
      _
    $region31: #{tpu_custom_call.1} parent=1 // pred_check_branch
      %58 = sbr.rel (0) target = $region33
    $region32: #{tpu_custom_call.1} parent=1 // pred_region
      %59 = dma.done [#allocation6], 1024
    $region33: #{tpu_custom_call.1} parent=1 // pred_fallthru
      _
    %v61 = vld [vmem:[#allocation2] sm:$0xff]
    %v62 = vpack.c.bf16 %v61, %v61
    %v63 = vld [vmem:[%s4] sm:$0x1]
    %v64 = vld [vmem:[%s4 + $0x1] sm:$0x1]
    %v65 = vld [vmem:[%s4 + $0x2] sm:$0x1]
    %v66 = vld [vmem:[#allocation5] sm:$0xf]
    %v67 = vld [vmem:[#allocation5 + $0x4] sm:$0xf]
    %v69 = vlaneseq
    %v70 = vshrl.u32 %v69, 7
    %v71 = vsub.s32 0, %v70
    %v72 = vrot.slane %v63, %v71
    %v76 = vunpack.c.l.b16 %v66
    %v77 = vunpack.c.l.b16 %v67
    %v78 = vpack.c.b16 %v77, %v76
    %vm80 = vcmask 130048
    %v82 = vsel %vm80, %v62, 0
    %84 = vmatprep.subr.bf16.mxu0 0
    %85 = vmatpush1.bf16.msra.mxu0 0
    %86 = vmatprep.subr.bf16.mxu0 0
    %87 = vmatpush1.bf16.msra.mxu0 0
    %88 = vmatprep.subr.bf16.mxu0 0
    %89 = vmatpush1.bf16.msra.mxu0 0
    %90 = vmatprep.subr.bf16.mxu0 0
    %91 = vmatpush1.bf16.msra.mxu0 0
    %92 = vmatprep.subr.bf16.mxu0 0
    %93 = vmatpush1.bf16.msra.mxu0 0
    %94 = vmatprep.subr.bf16.mxu0 0
    %95 = vmatpush1.bf16.msra.mxu0 0
    %96 = vmatprep.subr.bf16.mxu0 0
    %97 = vmatpush1.bf16.msra.mxu0 0
    %98 = vmatprep.subr.bf16.mxu0 0
    %99 = vmatpush1.bf16.msra.mxu0 %v78
    %100 = vmatprep.subr.bf16.mxu0 0
    %101 = vmatpush2.bf16.msra.mxu0 0
    %102 = vmatprep.subr.bf16.mxu0 0
    %103 = vmatpush2.bf16.msra.mxu0 0
    %104 = vmatprep.subr.bf16.mxu0 0
    %105 = vmatpush2.bf16.msra.mxu0 0
    %106 = vmatprep.subr.bf16.mxu0 0
    %107 = vmatpush2.bf16.msra.mxu0 0
    %108 = vmatprep.subr.bf16.mxu0 0
    %109 = vmatpush2.bf16.msra.mxu0 0
    %110 = vmatprep.subr.bf16.mxu0 0
    %111 = vmatpush2.bf16.msra.mxu0 0
    %112 = vmatprep.subr.bf16.mxu0 0
    %113 = vmatpush2.bf16.msra.mxu0 0
    %114 = vmatprep.subr.bf16.mxu0 0
    %115 = vmatpush2.bf16.msra.mxu0 0
    %116 = vmatprep.mubr.bf16.mxu0 0
    %117 = vmatmul.mubr.bf16.gmra.mxu0 %v82
    %v118 = vpop.f32.mrf.mxu0
    %v119 = vadd.f32 %v72, %v118
    %v120 = vpop.f32.mrf.mxu0
    %v121 = vpop.f32.mrf.mxu0
    %v122 = vpop.f32.mrf.mxu0
    %123 = vdwg.mxu0
    %v124 = vmax.f32 %v119, 0.0
    %v125 = vpack.c.bf16 %v124, %v124
    %v126 = vld [vmem:[#allocation7] sm:$0xf]
    %v127 = vld [vmem:[#allocation7 + $0x4] sm:$0xf]
    %v128 = vld [vmem:[#allocation7 + $0x8] sm:$0xf]
    %v129 = vld [vmem:[#allocation7 + $0xc] sm:$0xf]
    %v130 = vld [vmem:[#allocation7 + $0x10] sm:$0xf]
    %v131 = vld [vmem:[#allocation7 + $0x14] sm:$0xf]
    %v132 = vld [vmem:[#allocation7 + $0x18] sm:$0xf]
    %v133 = vld [vmem:[#allocation7 + $0x1c] sm:$0xf]
    %v134 = vld [vmem:[#allocation7 + $0x20] sm:$0xf]
    %v135 = vld [vmem:[#allocation7 + $0x24] sm:$0xf]
    %v136 = vld [vmem:[#allocation7 + $0x28] sm:$0xf]
    %v137 = vld [vmem:[#allocation7 + $0x2c] sm:$0xf]
    %v138 = vld [vmem:[#allocation7 + $0x30] sm:$0xf]
    %v139 = vld [vmem:[#allocation7 + $0x34] sm:$0xf]
    %v140 = vld [vmem:[#allocation7 + $0x38] sm:$0xf]
    %v141 = vld [vmem:[#allocation7 + $0x3c] sm:$0xf]
    %v143 = vlaneseq
    %v144 = vshrl.u32 %v143, 7
    %v145 = vsub.s32 0, %v144
    %v146 = vrot.slane %v64, %v145
    %v164 = vunpack.c.l.b16 %v126
    %v165 = vunpack.c.l.b16 %v127
    %v166 = vunpack.c.l.b16 %v128
    %v167 = vunpack.c.l.b16 %v129
    %v168 = vunpack.c.l.b16 %v130
    %v169 = vunpack.c.l.b16 %v131
    %v170 = vunpack.c.l.b16 %v132
    %v171 = vunpack.c.l.b16 %v133
    %v172 = vunpack.c.l.b16 %v134
    %v173 = vunpack.c.l.b16 %v135
    %v174 = vunpack.c.l.b16 %v136
    %v175 = vunpack.c.l.b16 %v137
    %v176 = vunpack.c.l.b16 %v138
    %v177 = vunpack.c.l.b16 %v139
    %v178 = vunpack.c.l.b16 %v140
    %v179 = vunpack.c.l.b16 %v141
    %v180 = vpack.c.b16 %v165, %v164
    %v181 = vpack.c.b16 %v167, %v166
    %v182 = vpack.c.b16 %v169, %v168
    %v183 = vpack.c.b16 %v171, %v170
    %v184 = vpack.c.b16 %v173, %v172
    %v185 = vpack.c.b16 %v175, %v174
    %v186 = vpack.c.b16 %v177, %v176
    %v187 = vpack.c.b16 %v179, %v178
    %196 = vmatprep.subr.bf16.mxu0 0
    %197 = vmatpush1.bf16.msra.mxu0 %v187
    %198 = vmatprep.subr.bf16.mxu0 0
    %199 = vmatpush1.bf16.msra.mxu0 %v186
    %200 = vmatprep.subr.bf16.mxu0 0
    %201 = vmatpush1.bf16.msra.mxu0 %v185
    %202 = vmatprep.subr.bf16.mxu0 0
    %203 = vmatpush1.bf16.msra.mxu0 %v184
    %204 = vmatprep.subr.bf16.mxu0 0
    %205 = vmatpush1.bf16.msra.mxu0 %v183
    %206 = vmatprep.subr.bf16.mxu0 0
    %207 = vmatpush1.bf16.msra.mxu0 %v182
    %208 = vmatprep.subr.bf16.mxu0 0
    %209 = vmatpush1.bf16.msra.mxu0 %v181
    %210 = vmatprep.subr.bf16.mxu0 0
    %211 = vmatpush1.bf16.msra.mxu0 %v180
    %212 = vmatprep.subr.bf16.mxu0 0
    %213 = vmatpush2.bf16.msra.mxu0 0
    %214 = vmatprep.subr.bf16.mxu0 0
    %215 = vmatpush2.bf16.msra.mxu0 0
    %216 = vmatprep.subr.bf16.mxu0 0
    %217 = vmatpush2.bf16.msra.mxu0 0
    %218 = vmatprep.subr.bf16.mxu0 0
    %219 = vmatpush2.bf16.msra.mxu0 0
    %220 = vmatprep.subr.bf16.mxu0 0
    %221 = vmatpush2.bf16.msra.mxu0 0
    %222 = vmatprep.subr.bf16.mxu0 0
    %223 = vmatpush2.bf16.msra.mxu0 0
    %224 = vmatprep.subr.bf16.mxu0 0
    %225 = vmatpush2.bf16.msra.mxu0 0
    %226 = vmatprep.subr.bf16.mxu0 0
    %227 = vmatpush2.bf16.msra.mxu0 0
    %228 = vmatprep.mubr.bf16.mxu0 0
    %229 = vmatmul.mubr.bf16.gmra.mxu0 %v125
    %v230 = vpop.f32.mrf.mxu0
    %v231 = vadd.f32 %v146, %v230
    %v232 = vpop.f32.mrf.mxu0
    %v233 = vpop.f32.mrf.mxu0
    %v234 = vpop.f32.mrf.mxu0
    %235 = vdwg.mxu0
    %v236 = vmax.f32 %v231, 0.0
    %v237 = vpack.c.bf16 %v236, %v236
    %v238 = vld [vmem:[%s3] sm:$0xf]
    %v240 = vlaneseq
    %v241 = vshrl.u32 %v240, 7
    %v242 = vsub.s32 0, %v241
    %v243 = vrot.slane %v65, %v242
    %244 = vset.pattern.permute.xlu0 0
    %245 = vperm.xlu0 %244, %v243
    %v246 = vpop.permute.xlu0 %245
    %248 = vmatprep.subr.bf16.mxu0 0
    %249 = vmatpush1.bf16.xpose.msra.mxu0 0
    %250 = vmatprep.subr.bf16.mxu0 0
    %251 = vmatpush1.bf16.xpose.msra.mxu0 0
    %252 = vmatprep.subr.bf16.mxu0 0
    %253 = vmatpush1.bf16.xpose.msra.mxu0 0
    %254 = vmatprep.subr.bf16.mxu0 0
    %255 = vmatpush1.bf16.xpose.msra.mxu0 0
    %256 = vmatprep.subr.bf16.mxu0 0
    %257 = vmatpush1.bf16.xpose.msra.mxu0 0
    %258 = vmatprep.subr.bf16.mxu0 0
    %259 = vmatpush1.bf16.xpose.msra.mxu0 0
    %260 = vmatprep.subr.bf16.mxu0 0
    %261 = vmatpush1.bf16.xpose.msra.mxu0 0
    %262 = vmatprep.subr.bf16.mxu0 0
    %263 = vmatpush1.bf16.xpose.msra.mxu0 %v237
    %264 = vmatprep.subr.bf16.mxu0 0
    %265 = vmatpush2.bf16.xpose.msra.mxu0 0
    %266 = vmatprep.subr.bf16.mxu0 0
    %267 = vmatpush2.bf16.xpose.msra.mxu0 0
    %268 = vmatprep.subr.bf16.mxu0 0
    %269 = vmatpush2.bf16.xpose.msra.mxu0 0
    %270 = vmatprep.subr.bf16.mxu0 0
    %271 = vmatpush2.bf16.xpose.msra.mxu0 0
    %272 = vmatprep.subr.bf16.mxu0 0
    %273 = vmatpush2.bf16.xpose.msra.mxu0 0
    %274 = vmatprep.subr.bf16.mxu0 0
    %275 = vmatpush2.bf16.xpose.msra.mxu0 0
    %276 = vmatprep.subr.bf16.mxu0 0
    %277 = vmatpush2.bf16.xpose.msra.mxu0 0
    %278 = vmatprep.subr.bf16.mxu0 0
    %279 = vmatpush2.bf16.xpose.msra.mxu0 0
    %280 = vmatprep.mubr.bf16.mxu0 0
    %281 = vmatmul.mubr.bf16.gmra.mxu0 %v238
    %v282 = vpop.f32.mrf.mxu0
    %v283 = vadd.f32 %v246, %v282
    %v284 = vpop.f32.mrf.mxu0
    %v285 = vpop.f32.mrf.mxu0
    %v286 = vpop.f32.mrf.mxu0
    %287 = vdwg.mxu0
    %vm288 = vcmask 64512
    %289 = vst.msk [vmem:[#allocation8] sm:$0xff] %vm288, %v283
    // Predicated region
    $region34: #{tpu_custom_call.1} parent=1 // pred_check
      _
    $region35: #{tpu_custom_call.1} parent=1 // pred_check_branch
      %291 = sbr.rel (0) target = $region37
    $region36: #{tpu_custom_call.1} parent=1 // pred_region
      %s293 = ssub.s32 128, 128
      %294 = vsyncadd [#allocation4], %s293
      %s296 = sshll.u32 [#allocation8], 4
      %s297 = int_to_ptr.vmem [resolvable:$true] %s296
      %299 = dma.vmem_to_hbm [thread:$0]  %s297, 128, %s5, [#allocation4]
    $region37: #{tpu_custom_call.1} parent=1 // pred_fallthru
      _
    // Predicated region
    $region38: #{tpu_custom_call.1} parent=1 // pred_check
      _
    $region39: #{tpu_custom_call.1} parent=1 // pred_check_branch
      %301 = sbr.rel (0) target = $region41
    $region40: #{tpu_custom_call.1} parent=1 // pred_region
      %302 = dma.done [#allocation4], 128
    $region41: #{tpu_custom_call.1} parent=1 // pred_fallthru
      _
    %303 = vsyncpa [#allocation3], 1
    %304 = vsyncpa [#allocation6], 1
    %305 = vsyncpa [#allocation4], 1

</llo_original>
